<compile_context>
chip_gen: v5e
topology: v5e:2x2
jax: 0.10.0
libtpu: 0.0.40
codegen_flags: <defaults>
</compile_context>

<pallas_src>
import functools

import jax
import jax.numpy as jnp
from jax import lax
from jax.experimental import pallas as pl
from jax.experimental.pallas import tpu as pltpu

EPS = 1e-5  # PyTorch BatchNorm2d default eps


def _tcn_fused_kernel(x_ref, bnp_ref, w_ref, o_ref, ypad_ref,
                      *, N, C, T, T_out, V, K, pad):
    """Fully fused TCN forward; the whole (small) batch is held in VMEM.

    x_ref:    (N, C, T*V)          lane-dense input (NCHW with (T,V) flattened)
    bnp_ref:  (C, 4)               columns: [bn1_gamma, bn1_beta, bn2_gamma, bn2_beta]
    w_ref:    (K, C_out, C_in)     conv weight, w[k, co, ci]
    o_ref:    (N, C, T_out*V)      final output (BN2 applied, dropout p=0 identity)
    ypad_ref: (N, C, (T+2*pad)*V)  VMEM scratch: time-padded post-BN1/ReLU activations
    """
    L = T_out * V
    x = x_ref[...].astype(jnp.float32)                               # (N, C, T*V)

    # ---- BatchNorm2d #1: batch statistics (two-pass, numerically robust)
    cnt1 = float(N * T * V)
    m1 = jnp.sum(jnp.sum(x, axis=2, keepdims=True), axis=0, keepdims=True) / cnt1
    xc = x - m1                                                      # (N, C, T*V)
    v1 = jnp.sum(jnp.sum(xc * xc, axis=2, keepdims=True), axis=0, keepdims=True) / cnt1
    g1 = bnp_ref[:, 0:1][None]                                       # (1, C, 1)
    b1 = bnp_ref[:, 1:2][None]
    s1 = g1 * lax.rsqrt(v1 + EPS)

    # ---- BN1 apply + ReLU
    y = jnp.maximum(xc * s1 + b1, 0.0)                               # (N, C, T*V)

    # ---- time padding: zero only the two pad slabs, then write the interior
    if pad > 0:
        zslab = jnp.zeros((N, C, pad * V), jnp.float32)
        ypad_ref[:, :, :pad * V] = zslab
        ypad_ref[:, :, (pad + T) * V:] = zslab
    ypad_ref[:, :, pad * V:(pad + T) * V] = y

    # ---- Conv2d(C, C, (K, 1)) as K accumulated MXU matmuls per batch element.
    # TODO(synk): for production C (>=128) cast operands to bf16 (keep f32 accum) for
    # full MXU throughput and tile T_out*V over a real grid; irrelevant at C=8.
    z_list = []
    for n in range(N):
        ypn = ypad_ref[n]                                            # (C, (T+2*pad)*V)
        acc = jnp.zeros((C, L), jnp.float32)
        for k in range(K):
            acc = acc + jnp.dot(w_ref[k], ypn[:, k * V:k * V + L],
                                preferred_element_type=jnp.float32)
        z_list.append(acc)
    # conv bias intentionally skipped: exactly cancelled by training-mode BN2 below.

    # ---- BatchNorm2d #2: batch statistics from in-register z (no HBM round-trip)
    cnt2 = float(N * T_out * V)
    ssum = jnp.zeros((C, 1), jnp.float32)
    for zn in z_list:
        ssum = ssum + jnp.sum(zn, axis=1, keepdims=True)
    m2 = ssum / cnt2                                                 # (C, 1)
    vsum = jnp.zeros((C, 1), jnp.float32)
    for zn in z_list:
        d = zn - m2
        vsum = vsum + jnp.sum(d * d, axis=1, keepdims=True)
    v2 = vsum / cnt2
    g2 = bnp_ref[:, 2:3]
    b2 = bnp_ref[:, 3:4]
    s2 = g2 * lax.rsqrt(v2 + EPS)

    # ---- BN2 apply (Dropout(p=0) = identity), store the final output directly
    # TODO(synk): dropout with p > 0 (training-mode random mask) not implemented.
    for n, zn in enumerate(z_list):
        o_ref[n] = ((zn - m2) * s2 + b2).astype(o_ref.dtype)


def tcn_forward(x_nchw, params, kernel_size, stride=1):
    """Pallas TCN forward.  x_nchw: (N, C, T, V) float32 -> (N, C, T_out, V)."""
    assert stride == 1  # TODO(synk): stride > 1 temporal subsampling not implemented.
    N, C, T, V = x_nchw.shape
    K = kernel_size
    pad = (K - 1) // 2
    T_out = T + 2 * pad - K + 1

    # Free, contiguous reshape (no HBM transpose): lane dim becomes T*V (dense).
    # Perf note: T*V a multiple of 128 keeps all stores unmasked / lane-dense.
    x = x_nchw.reshape(N, C, T * V)

    # BN affine params packed into one small (C, 4) array: [g1, b1, g2, b2].
    bn_params = jnp.stack([params["bn1_gamma"], params["bn1_beta"],
                           params["bn2_gamma"], params["bn2_beta"]],
                          axis=1).astype(jnp.float32)

    # conv weight (K, Cin, Cout) -> (K, Cout, Cin): w_k[k, co, ci] = conv_w[k, ci, co].
    w_k = jnp.transpose(params["conv_w"], (0, 2, 1)).astype(jnp.float32)
    # conv bias not passed on purpose: exactly cancelled by training-mode BN2
    # (batch-mean subtraction).  Only valid while BN2 uses batch statistics.

    kern = functools.partial(_tcn_fused_kernel,
                             N=N, C=C, T=T, T_out=T_out, V=V, K=K, pad=pad)
    out = pl.pallas_call(
        kern,
        out_shape=jax.ShapeDtypeStruct((N, C, T_out * V), x_nchw.dtype),
        grid=(1,),  # whole problem fits VMEM: one fused step, zero HBM intermediates
        in_specs=[
            pl.BlockSpec((N, C, T * V), lambda i: (0, 0, 0)),   # x (lane-dense)
            pl.BlockSpec((C, 4), lambda i: (0, 0)),             # BN affine params
            pl.BlockSpec((K, C, C), lambda i: (0, 0, 0)),       # conv weight per tap
        ],
        out_specs=pl.BlockSpec((N, C, T_out * V), lambda i: (0, 0, 0)),
        scratch_shapes=[pltpu.VMEM((N, C, (T + 2 * pad) * V), jnp.float32)],
        compiler_params=pltpu.CompilerParams(dimension_semantics=("arbitrary",)),
    )(x, bn_params, w_k)
    # TODO(synk): for large N / C / T*V that don't fit VMEM, tile over a grid with the
    # BN statistics accumulated in VMEM scratch across steps instead of a single step.

    return out.reshape(N, C, T_out, V)   # free reshape back to NCHW


def tcn_reference(x_nchw, params, kernel_size, stride=1):
    """Pure-JAX reference matching torch semantics (training-mode BN, p=0 dropout)."""
    K = kernel_size
    pad = (K - 1) // 2

    def bn(x, g, b):
        m = jnp.mean(x, axis=(0, 2, 3), keepdims=True)
        v = jnp.mean((x - m) ** 2, axis=(0, 2, 3), keepdims=True)
        return (x - m) / jnp.sqrt(v + EPS) * g.reshape(1, -1, 1, 1) + b.reshape(1, -1, 1, 1)

    y = jax.nn.relu(bn(x_nchw, params["bn1_gamma"], params["bn1_beta"]))
    w_oihw = jnp.transpose(params["conv_w"], (2, 1, 0))[:, :, :, None]  # (Co, Ci, K, 1)
    y = lax.conv_general_dilated(
        y, w_oihw, window_strides=(stride, 1), padding=((pad, pad), (0, 0)),
        dimension_numbers=("NCHW", "OIHW", "NCHW"))
    y = y + params["conv_b"].reshape(1, -1, 1, 1)
    return bn(y, params["bn2_gamma"], params["bn2_beta"])


if __name__ == "__main__":
    N, C, T, V = 4, 8, 16, 16   # (batch, out_channels, time, vertices); T*V = 256 lanes
    K = 3                        # kernel_size

    key = jax.random.PRNGKey(0)
    ks = jax.random.split(key, 7)
    x = jax.random.normal(ks[0], (N, C, T, V), jnp.float32)
    params = {
        "bn1_gamma": jax.random.uniform(ks[1], (C,), jnp.float32, 0.5, 1.5),
        "bn1_beta":  jax.random.normal(ks[2], (C,), jnp.float32) * 0.1,
        "conv_w":    jax.random.normal(ks[3], (K, C, C), jnp.float32) / jnp.sqrt(C * K),
        "conv_b":    jax.random.normal(ks[4], (C,), jnp.float32) * 0.1,
        "bn2_gamma": jax.random.uniform(ks[5], (C,), jnp.float32, 0.5, 1.5),
        "bn2_beta":  jax.random.normal(ks[6], (C,), jnp.float32) * 0.1,
    }

    out = jax.block_until_ready(tcn_forward(x, params, kernel_size=K))
    ref = tcn_reference(x, params, kernel_size=K)
    assert out.shape == ref.shape, (out.shape, ref.shape)
    assert jnp.allclose(out, ref, rtol=1e-3, atol=1e-3), \
        float(jnp.max(jnp.abs(out - ref)))
    print("KERNEL_OK")
</pallas_src>

<mosaic_0001>
module attributes {stable_mosaic.version = 11 : i64} {
  func.func @_tcn_fused_kernel(%arg0: i32, %arg1: memref<4x8x256xf32, #tpu.memory_space<vmem>>, %arg2: memref<8x4xf32, #tpu.memory_space<vmem>>, %arg3: memref<3x8x8xf32, #tpu.memory_space<vmem>>, %arg4: memref<4x8x256xf32, #tpu.memory_space<vmem>>, %arg5: memref<4x8x288xf32, #tpu.memory_space<vmem>>) attributes {dimension_semantics = [#tpu.dimension_semantics<arbitrary>], iteration_bounds = array<i64: 1>, scalar_prefetch = 0 : i64, scratch_operands = 1 : i64, tpu.core_type = #tpu.core_type<tc>, window_params = [{pipeline_mode = #tpu.pipeline_mode<synchronous>, transform_indices = @transform_0, window_bounds = array<i64: 4, 8, 256>}, {pipeline_mode = #tpu.pipeline_mode<synchronous>, transform_indices = @transform_1, window_bounds = array<i64: 8, 4>}, {pipeline_mode = #tpu.pipeline_mode<synchronous>, transform_indices = @transform_2, window_bounds = array<i64: 3, 8, 8>}, {pipeline_mode = #tpu.pipeline_mode<synchronous>, transform_indices = @transform_3, window_bounds = array<i64: 4, 8, 256>}]} {
    %c0 = arith.constant 0 : index
    %c0_0 = arith.constant 0 : index
    %c0_1 = arith.constant 0 : index
    %0 = vector.load %arg1[%c0, %c0_0, %c0_1] : memref<4x8x256xf32, #tpu.memory_space<vmem>>, vector<4x8x256xf32>
    %cst = arith.constant dense<0.000000e+00> : vector<4x8xf32>
    %1 = vector.multi_reduction <add>, %0, %cst [2] : vector<4x8x256xf32> to vector<4x8xf32>
    %2 = vector.shape_cast %1 : vector<4x8xf32> to vector<4x8x1xf32>
    %cst_2 = arith.constant dense<0.000000e+00> : vector<8x1xf32>
    %3 = vector.multi_reduction <add>, %2, %cst_2 [0] : vector<4x8x1xf32> to vector<8x1xf32>
    %4 = vector.shape_cast %3 : vector<8x1xf32> to vector<1x8x1xf32>
    %cst_3 = arith.constant 1.024000e+03 : f32
    %5 = vector.broadcast %cst_3 : f32 to vector<1x8x1xf32>
    %6 = arith.divf %4, %5 : vector<1x8x1xf32>
    %7 = vector.broadcast %6 : vector<1x8x1xf32> to vector<4x8x256xf32>
    %8 = arith.subf %0, %7 : vector<4x8x256xf32>
    %9 = arith.mulf %8, %8 : vector<4x8x256xf32>
    %cst_4 = arith.constant dense<0.000000e+00> : vector<4x8xf32>
    %10 = vector.multi_reduction <add>, %9, %cst_4 [2] : vector<4x8x256xf32> to vector<4x8xf32>
    %11 = vector.shape_cast %10 : vector<4x8xf32> to vector<4x8x1xf32>
    %cst_5 = arith.constant dense<0.000000e+00> : vector<8x1xf32>
    %12 = vector.multi_reduction <add>, %11, %cst_5 [0] : vector<4x8x1xf32> to vector<8x1xf32>
    %13 = vector.shape_cast %12 : vector<8x1xf32> to vector<1x8x1xf32>
    %cst_6 = arith.constant 1.024000e+03 : f32
    %14 = vector.broadcast %cst_6 : f32 to vector<1x8x1xf32>
    %15 = arith.divf %13, %14 : vector<1x8x1xf32>
    %c0_7 = arith.constant 0 : index
    %c0_8 = arith.constant 0 : index
    %16 = vector.load %arg2[%c0_7, %c0_8] : memref<8x4xf32, #tpu.memory_space<vmem>>, vector<8x1xf32>
    %17 = vector.shape_cast %16 : vector<8x1xf32> to vector<1x8x1xf32>
    %c0_9 = arith.constant 0 : index
    %c1 = arith.constant 1 : index
    %18 = vector.load %arg2[%c0_9, %c1] : memref<8x4xf32, #tpu.memory_space<vmem>>, vector<8x1xf32>
    %19 = vector.shape_cast %18 : vector<8x1xf32> to vector<1x8x1xf32>
    %cst_10 = arith.constant 9.99999974E-6 : f32
    %20 = vector.broadcast %cst_10 : f32 to vector<1x8x1xf32>
    %21 = arith.addf %15, %20 : vector<1x8x1xf32>
    %22 = math.rsqrt %21 : vector<1x8x1xf32>
    %23 = arith.mulf %17, %22 : vector<1x8x1xf32>
    %24 = vector.broadcast %23 : vector<1x8x1xf32> to vector<4x8x256xf32>
    %25 = arith.mulf %8, %24 : vector<4x8x256xf32>
    %26 = vector.broadcast %19 : vector<1x8x1xf32> to vector<4x8x256xf32>
    %27 = arith.addf %25, %26 : vector<4x8x256xf32>
    %cst_11 = arith.constant 0.000000e+00 : f32
    %28 = vector.broadcast %cst_11 : f32 to vector<4x8x256xf32>
    %29 = arith.maximumf %27, %28 : vector<4x8x256xf32>
    %cst_12 = arith.constant 0.000000e+00 : f32
    %30 = vector.broadcast %cst_12 : f32 to vector<4x8x16xf32>
    %c0_13 = arith.constant 0 : index
    %c0_14 = arith.constant 0 : index
    %c0_15 = arith.constant 0 : index
    %31 = vector.load %arg5[%c0_13, %c0_14, %c0_15] : memref<4x8x288xf32, #tpu.memory_space<vmem>>, vector<4x8x16xf32>
    tpu.vector_store %arg5[%c0_13, %c0_14, %c0_15], %30 {strides = array<i32>} : memref<4x8x288xf32, #tpu.memory_space<vmem>>, vector<4x8x16xf32>,
    %c0_16 = arith.constant 0 : index
    %c0_17 = arith.constant 0 : index
    %c272 = arith.constant 272 : index
    %32 = vector.load %arg5[%c0_16, %c0_17, %c272] : memref<4x8x288xf32, #tpu.memory_space<vmem>>, vector<4x8x16xf32>
    tpu.vector_store %arg5[%c0_16, %c0_17, %c272], %30 {strides = array<i32>} : memref<4x8x288xf32, #tpu.memory_space<vmem>>, vector<4x8x16xf32>,
    %c0_18 = arith.constant 0 : index
    %c0_19 = arith.constant 0 : index
    %c16 = arith.constant 16 : index
    %33 = vector.load %arg5[%c0_18, %c0_19, %c16] : memref<4x8x288xf32, #tpu.memory_space<vmem>>, vector<4x8x256xf32>
    tpu.vector_store %arg5[%c0_18, %c0_19, %c16], %29 {strides = array<i32>} : memref<4x8x288xf32, #tpu.memory_space<vmem>>, vector<4x8x256xf32>,
    %c0_20 = arith.constant 0 : index
    %c0_21 = arith.constant 0 : index
    %c0_22 = arith.constant 0 : index
    %34 = vector.load %arg5[%c0_20, %c0_21, %c0_22] : memref<4x8x288xf32, #tpu.memory_space<vmem>>, vector<1x8x288xf32>
    %35 = vector.shape_cast %34 : vector<1x8x288xf32> to vector<8x288xf32>
    %cst_23 = arith.constant 0.000000e+00 : f32
    %36 = vector.broadcast %cst_23 : f32 to vector<8x256xf32>
    %c0_24 = arith.constant 0 : index
    %c0_25 = arith.constant 0 : index
    %c0_26 = arith.constant 0 : index
    %37 = vector.load %arg3[%c0_24, %c0_25, %c0_26] : memref<3x8x8xf32, #tpu.memory_space<vmem>>, vector<1x8x8xf32>
    %38 = vector.shape_cast %37 : vector<1x8x8xf32> to vector<8x8xf32>
    %39 = vector.extract_strided_slice %35 {offsets = [0, 0], sizes = [8, 256], strides = [1, 1]} : vector<8x288xf32> to vector<8x256xf32>
    %cst_27 = arith.constant dense<0.000000e+00> : vector<8x256xf32>
    %40 = tpu.matmul %38, %39, %cst_27 {dimension_numbers = #tpu.dot_dimension_numbers<[1], [0], [0], [1], [0, 0, 1, 1], [], []>} : vector<8x8xf32>, vector<8x256xf32>, vector<8x256xf32> -> vector<8x256xf32>
    %41 = arith.addf %36, %40 : vector<8x256xf32>
    %c1_28 = arith.constant 1 : index
    %c0_29 = arith.constant 0 : index
    %c0_30 = arith.constant 0 : index
    %42 = vector.load %arg3[%c1_28, %c0_29, %c0_30] : memref<3x8x8xf32, #tpu.memory_space<vmem>>, vector<1x8x8xf32>
    %43 = vector.shape_cast %42 : vector<1x8x8xf32> to vector<8x8xf32>
    %44 = vector.extract_strided_slice %35 {offsets = [0, 16], sizes = [8, 256], strides = [1, 1]} : vector<8x288xf32> to vector<8x256xf32>
    %cst_31 = arith.constant dense<0.000000e+00> : vector<8x256xf32>
    %45 = tpu.matmul %43, %44, %cst_31 {dimension_numbers = #tpu.dot_dimension_numbers<[1], [0], [0], [1], [0, 0, 1, 1], [], []>} : vector<8x8xf32>, vector<8x256xf32>, vector<8x256xf32> -> vector<8x256xf32>
    %46 = arith.addf %41, %45 : vector<8x256xf32>
    %c2 = arith.constant 2 : index
    %c0_32 = arith.constant 0 : index
    %c0_33 = arith.constant 0 : index
    %47 = vector.load %arg3[%c2, %c0_32, %c0_33] : memref<3x8x8xf32, #tpu.memory_space<vmem>>, vector<1x8x8xf32>
    %48 = vector.shape_cast %47 : vector<1x8x8xf32> to vector<8x8xf32>
    %49 = vector.extract_strided_slice %35 {offsets = [0, 32], sizes = [8, 256], strides = [1, 1]} : vector<8x288xf32> to vector<8x256xf32>
    %cst_34 = arith.constant dense<0.000000e+00> : vector<8x256xf32>
    %50 = tpu.matmul %48, %49, %cst_34 {dimension_numbers = #tpu.dot_dimension_numbers<[1], [0], [0], [1], [0, 0, 1, 1], [], []>} : vector<8x8xf32>, vector<8x256xf32>, vector<8x256xf32> -> vector<8x256xf32>
    %51 = arith.addf %46, %50 : vector<8x256xf32>
    %c1_35 = arith.constant 1 : index
    %c0_36 = arith.constant 0 : index
    %c0_37 = arith.constant 0 : index
    %52 = vector.load %arg5[%c1_35, %c0_36, %c0_37] : memref<4x8x288xf32, #tpu.memory_space<vmem>>, vector<1x8x288xf32>
    %53 = vector.shape_cast %52 : vector<1x8x288xf32> to vector<8x288xf32>
    %cst_38 = arith.constant 0.000000e+00 : f32
    %54 = vector.broadcast %cst_38 : f32 to vector<8x256xf32>
    %c0_39 = arith.constant 0 : index
    %c0_40 = arith.constant 0 : index
    %c0_41 = arith.constant 0 : index
    %55 = vector.load %arg3[%c0_39, %c0_40, %c0_41] : memref<3x8x8xf32, #tpu.memory_space<vmem>>, vector<1x8x8xf32>
    %56 = vector.shape_cast %55 : vector<1x8x8xf32> to vector<8x8xf32>
    %57 = vector.extract_strided_slice %53 {offsets = [0, 0], sizes = [8, 256], strides = [1, 1]} : vector<8x288xf32> to vector<8x256xf32>
    %cst_42 = arith.constant dense<0.000000e+00> : vector<8x256xf32>
    %58 = tpu.matmul %56, %57, %cst_42 {dimension_numbers = #tpu.dot_dimension_numbers<[1], [0], [0], [1], [0, 0, 1, 1], [], []>} : vector<8x8xf32>, vector<8x256xf32>, vector<8x256xf32> -> vector<8x256xf32>
    %59 = arith.addf %54, %58 : vector<8x256xf32>
    %c1_43 = arith.constant 1 : index
    %c0_44 = arith.constant 0 : index
    %c0_45 = arith.constant 0 : index
    %60 = vector.load %arg3[%c1_43, %c0_44, %c0_45] : memref<3x8x8xf32, #tpu.memory_space<vmem>>, vector<1x8x8xf32>
    %61 = vector.shape_cast %60 : vector<1x8x8xf32> to vector<8x8xf32>
    %62 = vector.extract_strided_slice %53 {offsets = [0, 16], sizes = [8, 256], strides = [1, 1]} : vector<8x288xf32> to vector<8x256xf32>
    %cst_46 = arith.constant dense<0.000000e+00> : vector<8x256xf32>
    %63 = tpu.matmul %61, %62, %cst_46 {dimension_numbers = #tpu.dot_dimension_numbers<[1], [0], [0], [1], [0, 0, 1, 1], [], []>} : vector<8x8xf32>, vector<8x256xf32>, vector<8x256xf32> -> vector<8x256xf32>
    %64 = arith.addf %59, %63 : vector<8x256xf32>
    %c2_47 = arith.constant 2 : index
    %c0_48 = arith.constant 0 : index
    %c0_49 = arith.constant 0 : index
    %65 = vector.load %arg3[%c2_47, %c0_48, %c0_49] : memref<3x8x8xf32, #tpu.memory_space<vmem>>, vector<1x8x8xf32>
    %66 = vector.shape_cast %65 : vector<1x8x8xf32> to vector<8x8xf32>
    %67 = vector.extract_strided_slice %53 {offsets = [0, 32], sizes = [8, 256], strides = [1, 1]} : vector<8x288xf32> to vector<8x256xf32>
    %cst_50 = arith.constant dense<0.000000e+00> : vector<8x256xf32>
    %68 = tpu.matmul %66, %67, %cst_50 {dimension_numbers = #tpu.dot_dimension_numbers<[1], [0], [0], [1], [0, 0, 1, 1], [], []>} : vector<8x8xf32>, vector<8x256xf32>, vector<8x256xf32> -> vector<8x256xf32>
    %69 = arith.addf %64, %68 : vector<8x256xf32>
    %c2_51 = arith.constant 2 : index
    %c0_52 = arith.constant 0 : index
    %c0_53 = arith.constant 0 : index
    %70 = vector.load %arg5[%c2_51, %c0_52, %c0_53] : memref<4x8x288xf32, #tpu.memory_space<vmem>>, vector<1x8x288xf32>
    %71 = vector.shape_cast %70 : vector<1x8x288xf32> to vector<8x288xf32>
    %cst_54 = arith.constant 0.000000e+00 : f32
    %72 = vector.broadcast %cst_54 : f32 to vector<8x256xf32>
    %c0_55 = arith.constant 0 : index
    %c0_56 = arith.constant 0 : index
    %c0_57 = arith.constant 0 : index
    %73 = vector.load %arg3[%c0_55, %c0_56, %c0_57] : memref<3x8x8xf32, #tpu.memory_space<vmem>>, vector<1x8x8xf32>
    %74 = vector.shape_cast %73 : vector<1x8x8xf32> to vector<8x8xf32>
    %75 = vector.extract_strided_slice %71 {offsets = [0, 0], sizes = [8, 256], strides = [1, 1]} : vector<8x288xf32> to vector<8x256xf32>
    %cst_58 = arith.constant dense<0.000000e+00> : vector<8x256xf32>
    %76 = tpu.matmul %74, %75, %cst_58 {dimension_numbers = #tpu.dot_dimension_numbers<[1], [0], [0], [1], [0, 0, 1, 1], [], []>} : vector<8x8xf32>, vector<8x256xf32>, vector<8x256xf32> -> vector<8x256xf32>
    %77 = arith.addf %72, %76 : vector<8x256xf32>
    %c1_59 = arith.constant 1 : index
    %c0_60 = arith.constant 0 : index
    %c0_61 = arith.constant 0 : index
    %78 = vector.load %arg3[%c1_59, %c0_60, %c0_61] : memref<3x8x8xf32, #tpu.memory_space<vmem>>, vector<1x8x8xf32>
    %79 = vector.shape_cast %78 : vector<1x8x8xf32> to vector<8x8xf32>
    %80 = vector.extract_strided_slice %71 {offsets = [0, 16], sizes = [8, 256], strides = [1, 1]} : vector<8x288xf32> to vector<8x256xf32>
    %cst_62 = arith.constant dense<0.000000e+00> : vector<8x256xf32>
    %81 = tpu.matmul %79, %80, %cst_62 {dimension_numbers = #tpu.dot_dimension_numbers<[1], [0], [0], [1], [0, 0, 1, 1], [], []>} : vector<8x8xf32>, vector<8x256xf32>, vector<8x256xf32> -> vector<8x256xf32>
    %82 = arith.addf %77, %81 : vector<8x256xf32>
    %c2_63 = arith.constant 2 : index
    %c0_64 = arith.constant 0 : index
    %c0_65 = arith.constant 0 : index
    %83 = vector.load %arg3[%c2_63, %c0_64, %c0_65] : memref<3x8x8xf32, #tpu.memory_space<vmem>>, vector<1x8x8xf32>
    %84 = vector.shape_cast %83 : vector<1x8x8xf32> to vector<8x8xf32>
    %85 = vector.extract_strided_slice %71 {offsets = [0, 32], sizes = [8, 256], strides = [1, 1]} : vector<8x288xf32> to vector<8x256xf32>
    %cst_66 = arith.constant dense<0.000000e+00> : vector<8x256xf32>
    %86 = tpu.matmul %84, %85, %cst_66 {dimension_numbers = #tpu.dot_dimension_numbers<[1], [0], [0], [1], [0, 0, 1, 1], [], []>} : vector<8x8xf32>, vector<8x256xf32>, vector<8x256xf32> -> vector<8x256xf32>
    %87 = arith.addf %82, %86 : vector<8x256xf32>
    %c3 = arith.constant 3 : index
    %c0_67 = arith.constant 0 : index
    %c0_68 = arith.constant 0 : index
    %88 = vector.load %arg5[%c3, %c0_67, %c0_68] : memref<4x8x288xf32, #tpu.memory_space<vmem>>, vector<1x8x288xf32>
    %89 = vector.shape_cast %88 : vector<1x8x288xf32> to vector<8x288xf32>
    %cst_69 = arith.constant 0.000000e+00 : f32
    %90 = vector.broadcast %cst_69 : f32 to vector<8x256xf32>
    %c0_70 = arith.constant 0 : index
    %c0_71 = arith.constant 0 : index
    %c0_72 = arith.constant 0 : index
    %91 = vector.load %arg3[%c0_70, %c0_71, %c0_72] : memref<3x8x8xf32, #tpu.memory_space<vmem>>, vector<1x8x8xf32>
    %92 = vector.shape_cast %91 : vector<1x8x8xf32> to vector<8x8xf32>
    %93 = vector.extract_strided_slice %89 {offsets = [0, 0], sizes = [8, 256], strides = [1, 1]} : vector<8x288xf32> to vector<8x256xf32>
    %cst_73 = arith.constant dense<0.000000e+00> : vector<8x256xf32>
    %94 = tpu.matmul %92, %93, %cst_73 {dimension_numbers = #tpu.dot_dimension_numbers<[1], [0], [0], [1], [0, 0, 1, 1], [], []>} : vector<8x8xf32>, vector<8x256xf32>, vector<8x256xf32> -> vector<8x256xf32>
    %95 = arith.addf %90, %94 : vector<8x256xf32>
    %c1_74 = arith.constant 1 : index
    %c0_75 = arith.constant 0 : index
    %c0_76 = arith.constant 0 : index
    %96 = vector.load %arg3[%c1_74, %c0_75, %c0_76] : memref<3x8x8xf32, #tpu.memory_space<vmem>>, vector<1x8x8xf32>
    %97 = vector.shape_cast %96 : vector<1x8x8xf32> to vector<8x8xf32>
    %98 = vector.extract_strided_slice %89 {offsets = [0, 16], sizes = [8, 256], strides = [1, 1]} : vector<8x288xf32> to vector<8x256xf32>
    %cst_77 = arith.constant dense<0.000000e+00> : vector<8x256xf32>
    %99 = tpu.matmul %97, %98, %cst_77 {dimension_numbers = #tpu.dot_dimension_numbers<[1], [0], [0], [1], [0, 0, 1, 1], [], []>} : vector<8x8xf32>, vector<8x256xf32>, vector<8x256xf32> -> vector<8x256xf32>
    %100 = arith.addf %95, %99 : vector<8x256xf32>
    %c2_78 = arith.constant 2 : index
    %c0_79 = arith.constant 0 : index
    %c0_80 = arith.constant 0 : index
    %101 = vector.load %arg3[%c2_78, %c0_79, %c0_80] : memref<3x8x8xf32, #tpu.memory_space<vmem>>, vector<1x8x8xf32>
    %102 = vector.shape_cast %101 : vector<1x8x8xf32> to vector<8x8xf32>
    %103 = vector.extract_strided_slice %89 {offsets = [0, 32], sizes = [8, 256], strides = [1, 1]} : vector<8x288xf32> to vector<8x256xf32>
    %cst_81 = arith.constant dense<0.000000e+00> : vector<8x256xf32>
    %104 = tpu.matmul %102, %103, %cst_81 {dimension_numbers = #tpu.dot_dimension_numbers<[1], [0], [0], [1], [0, 0, 1, 1], [], []>} : vector<8x8xf32>, vector<8x256xf32>, vector<8x256xf32> -> vector<8x256xf32>
    %105 = arith.addf %100, %104 : vector<8x256xf32>
    %cst_82 = arith.constant 0.000000e+00 : f32
    %106 = vector.broadcast %cst_82 : f32 to vector<8x1xf32>
    %cst_83 = arith.constant dense<0.000000e+00> : vector<8xf32>
    %107 = vector.multi_reduction <add>, %51, %cst_83 [1] : vector<8x256xf32> to vector<8xf32>
    %108 = vector.shape_cast %107 : vector<8xf32> to vector<8x1xf32>
    %109 = arith.addf %106, %108 : vector<8x1xf32>
    %cst_84 = arith.constant dense<0.000000e+00> : vector<8xf32>
    %110 = vector.multi_reduction <add>, %69, %cst_84 [1] : vector<8x256xf32> to vector<8xf32>
    %111 = vector.shape_cast %110 : vector<8xf32> to vector<8x1xf32>
    %112 = arith.addf %109, %111 : vector<8x1xf32>
    %cst_85 = arith.constant dense<0.000000e+00> : vector<8xf32>
    %113 = vector.multi_reduction <add>, %87, %cst_85 [1] : vector<8x256xf32> to vector<8xf32>
    %114 = vector.shape_cast %113 : vector<8xf32> to vector<8x1xf32>
    %115 = arith.addf %112, %114 : vector<8x1xf32>
    %cst_86 = arith.constant dense<0.000000e+00> : vector<8xf32>
    %116 = vector.multi_reduction <add>, %105, %cst_86 [1] : vector<8x256xf32> to vector<8xf32>
    %117 = vector.shape_cast %116 : vector<8xf32> to vector<8x1xf32>
    %118 = arith.addf %115, %117 : vector<8x1xf32>
    %cst_87 = arith.constant 1.024000e+03 : f32
    %119 = vector.broadcast %cst_87 : f32 to vector<8x1xf32>
    %120 = arith.divf %118, %119 : vector<8x1xf32>
    %cst_88 = arith.constant 0.000000e+00 : f32
    %121 = vector.broadcast %cst_88 : f32 to vector<8x1xf32>
    %122 = vector.broadcast %120 : vector<8x1xf32> to vector<8x256xf32>
    %123 = arith.subf %51, %122 : vector<8x256xf32>
    %124 = arith.mulf %123, %123 : vector<8x256xf32>
    %cst_89 = arith.constant dense<0.000000e+00> : vector<8xf32>
    %125 = vector.multi_reduction <add>, %124, %cst_89 [1] : vector<8x256xf32> to vector<8xf32>
    %126 = vector.shape_cast %125 : vector<8xf32> to vector<8x1xf32>
    %127 = arith.addf %121, %126 : vector<8x1xf32>
    %128 = vector.broadcast %120 : vector<8x1xf32> to vector<8x256xf32>
    %129 = arith.subf %69, %128 : vector<8x256xf32>
    %130 = arith.mulf %129, %129 : vector<8x256xf32>
    %cst_90 = arith.constant dense<0.000000e+00> : vector<8xf32>
    %131 = vector.multi_reduction <add>, %130, %cst_90 [1] : vector<8x256xf32> to vector<8xf32>
    %132 = vector.shape_cast %131 : vector<8xf32> to vector<8x1xf32>
    %133 = arith.addf %127, %132 : vector<8x1xf32>
    %134 = vector.broadcast %120 : vector<8x1xf32> to vector<8x256xf32>
    %135 = arith.subf %87, %134 : vector<8x256xf32>
    %136 = arith.mulf %135, %135 : vector<8x256xf32>
    %cst_91 = arith.constant dense<0.000000e+00> : vector<8xf32>
    %137 = vector.multi_reduction <add>, %136, %cst_91 [1] : vector<8x256xf32> to vector<8xf32>
    %138 = vector.shape_cast %137 : vector<8xf32> to vector<8x1xf32>
    %139 = arith.addf %133, %138 : vector<8x1xf32>
    %140 = vector.broadcast %120 : vector<8x1xf32> to vector<8x256xf32>
    %141 = arith.subf %105, %140 : vector<8x256xf32>
    %142 = arith.mulf %141, %141 : vector<8x256xf32>
    %cst_92 = arith.constant dense<0.000000e+00> : vector<8xf32>
    %143 = vector.multi_reduction <add>, %142, %cst_92 [1] : vector<8x256xf32> to vector<8xf32>
    %144 = vector.shape_cast %143 : vector<8xf32> to vector<8x1xf32>
    %145 = arith.addf %139, %144 : vector<8x1xf32>
    %cst_93 = arith.constant 1.024000e+03 : f32
    %146 = vector.broadcast %cst_93 : f32 to vector<8x1xf32>
    %147 = arith.divf %145, %146 : vector<8x1xf32>
    %c0_94 = arith.constant 0 : index
    %c2_95 = arith.constant 2 : index
    %148 = vector.load %arg2[%c0_94, %c2_95] : memref<8x4xf32, #tpu.memory_space<vmem>>, vector<8x1xf32>
    %c0_96 = arith.constant 0 : index
    %c3_97 = arith.constant 3 : index
    %149 = vector.load %arg2[%c0_96, %c3_97] : memref<8x4xf32, #tpu.memory_space<vmem>>, vector<8x1xf32>
    %cst_98 = arith.constant 9.99999974E-6 : f32
    %150 = vector.broadcast %cst_98 : f32 to vector<8x1xf32>
    %151 = arith.addf %147, %150 : vector<8x1xf32>
    %152 = math.rsqrt %151 : vector<8x1xf32>
    %153 = arith.mulf %148, %152 : vector<8x1xf32>
    %154 = vector.broadcast %120 : vector<8x1xf32> to vector<8x256xf32>
    %155 = arith.subf %51, %154 : vector<8x256xf32>
    %156 = vector.broadcast %153 : vector<8x1xf32> to vector<8x256xf32>
    %157 = arith.mulf %155, %156 : vector<8x256xf32>
    %158 = vector.broadcast %149 : vector<8x1xf32> to vector<8x256xf32>
    %159 = arith.addf %157, %158 : vector<8x256xf32>
    %c0_99 = arith.constant 0 : index
    %c0_100 = arith.constant 0 : index
    %c0_101 = arith.constant 0 : index
    %160 = vector.load %arg4[%c0_99, %c0_100, %c0_101] : memref<4x8x256xf32, #tpu.memory_space<vmem>>, vector<1x8x256xf32>
    %161 = vector.shape_cast %160 : vector<1x8x256xf32> to vector<8x256xf32>
    %162 = vector.shape_cast %159 : vector<8x256xf32> to vector<1x8x256xf32>
    tpu.vector_store %arg4[%c0_99, %c0_100, %c0_101], %162 {strides = array<i32>} : memref<4x8x256xf32, #tpu.memory_space<vmem>>, vector<1x8x256xf32>,
    %163 = vector.broadcast %120 : vector<8x1xf32> to vector<8x256xf32>
    %164 = arith.subf %69, %163 : vector<8x256xf32>
    %165 = vector.broadcast %153 : vector<8x1xf32> to vector<8x256xf32>
    %166 = arith.mulf %164, %165 : vector<8x256xf32>
    %167 = vector.broadcast %149 : vector<8x1xf32> to vector<8x256xf32>
    %168 = arith.addf %166, %167 : vector<8x256xf32>
    %c1_102 = arith.constant 1 : index
    %c0_103 = arith.constant 0 : index
    %c0_104 = arith.constant 0 : index
    %169 = vector.load %arg4[%c1_102, %c0_103, %c0_104] : memref<4x8x256xf32, #tpu.memory_space<vmem>>, vector<1x8x256xf32>
    %170 = vector.shape_cast %169 : vector<1x8x256xf32> to vector<8x256xf32>
    %171 = vector.shape_cast %168 : vector<8x256xf32> to vector<1x8x256xf32>
    tpu.vector_store %arg4[%c1_102, %c0_103, %c0_104], %171 {strides = array<i32>} : memref<4x8x256xf32, #tpu.memory_space<vmem>>, vector<1x8x256xf32>,
    %172 = vector.broadcast %120 : vector<8x1xf32> to vector<8x256xf32>
    %173 = arith.subf %87, %172 : vector<8x256xf32>
    %174 = vector.broadcast %153 : vector<8x1xf32> to vector<8x256xf32>
    %175 = arith.mulf %173, %174 : vector<8x256xf32>
    %176 = vector.broadcast %149 : vector<8x1xf32> to vector<8x256xf32>
    %177 = arith.addf %175, %176 : vector<8x256xf32>
    %c2_105 = arith.constant 2 : index
    %c0_106 = arith.constant 0 : index
    %c0_107 = arith.constant 0 : index
    %178 = vector.load %arg4[%c2_105, %c0_106, %c0_107] : memref<4x8x256xf32, #tpu.memory_space<vmem>>, vector<1x8x256xf32>
    %179 = vector.shape_cast %178 : vector<1x8x256xf32> to vector<8x256xf32>
    %180 = vector.shape_cast %177 : vector<8x256xf32> to vector<1x8x256xf32>
    tpu.vector_store %arg4[%c2_105, %c0_106, %c0_107], %180 {strides = array<i32>} : memref<4x8x256xf32, #tpu.memory_space<vmem>>, vector<1x8x256xf32>,
    %181 = vector.broadcast %120 : vector<8x1xf32> to vector<8x256xf32>
    %182 = arith.subf %105, %181 : vector<8x256xf32>
    %183 = vector.broadcast %153 : vector<8x1xf32> to vector<8x256xf32>
    %184 = arith.mulf %182, %183 : vector<8x256xf32>
    %185 = vector.broadcast %149 : vector<8x1xf32> to vector<8x256xf32>
    %186 = arith.addf %184, %185 : vector<8x256xf32>
    %c3_108 = arith.constant 3 : index
    %c0_109 = arith.constant 0 : index
    %c0_110 = arith.constant 0 : index
    %187 = vector.load %arg4[%c3_108, %c0_109, %c0_110] : memref<4x8x256xf32, #tpu.memory_space<vmem>>, vector<1x8x256xf32>
    %188 = vector.shape_cast %187 : vector<1x8x256xf32> to vector<8x256xf32>
    %189 = vector.shape_cast %186 : vector<8x256xf32> to vector<1x8x256xf32>
    tpu.vector_store %arg4[%c3_108, %c0_109, %c0_110], %189 {strides = array<i32>} : memref<4x8x256xf32, #tpu.memory_space<vmem>>, vector<1x8x256xf32>,
    return
  }
  func.func @transform_0(%arg0: i32) -> (i32, i32, i32) {
    %c0_i32 = arith.constant 0 : i32
    %c0_i32_0 = arith.constant 0 : i32
    %c0_i32_1 = arith.constant 0 : i32
    %c0_i32_2 = arith.constant 0 : i32
    return %c0_i32, %c0_i32_0, %c0_i32_1 : i32, i32, i32
  }
  func.func @transform_1(%arg0: i32) -> (i32, i32) {
    %c0_i32 = arith.constant 0 : i32
    %c0_i32_0 = arith.constant 0 : i32
    %c0_i32_1 = arith.constant 0 : i32
    return %c0_i32, %c0_i32_0 : i32, i32
  }
  func.func @transform_2(%arg0: i32) -> (i32, i32, i32) {
    %c0_i32 = arith.constant 0 : i32
    %c0_i32_0 = arith.constant 0 : i32
    %c0_i32_1 = arith.constant 0 : i32
    %c0_i32_2 = arith.constant 0 : i32
    return %c0_i32, %c0_i32_0, %c0_i32_1 : i32, i32, i32
  }
  func.func @transform_3(%arg0: i32) -> (i32, i32, i32) {
    %c0_i32 = arith.constant 0 : i32
    %c0_i32_0 = arith.constant 0 : i32
    %c0_i32_1 = arith.constant 0 : i32
    %c0_i32_2 = arith.constant 0 : i32
    return %c0_i32, %c0_i32_0, %c0_i32_1 : i32, i32, i32
  }
}

</mosaic_0001>

<llo_original>
// kernel: tpu_custom_call.1
$region0: #{tpu_custom_call.1}
  #allocation0 [shape = 'u32[]', space=smem, size = 0x4, offset = 0x4, fixed_abs, tag = 'smem constant byte address 0x4 - core index']
  #allocation1 [shape = 'u32[72,128]{1,0:T(1,128)}', space=vmem, size = 0x9000, scoped, tag = 'internal scratch']
  #allocation2 [shape = 'f32[4,8,288]{2,1,0:T(8,128)}', space=vmem, size = 0xc000, scoped, tag = 'scratch operand']
  %s0 = inlined_call_operand.hbm [shape: f32[4,8,256], index: 0, kind: input, shape index: {}]
  %s1 = inlined_call_operand.vmem [shape: f32[8,4], index: 1, kind: input, shape index: {}]
  %s2 = inlined_call_operand.hbm [shape: f32[3,8,8], index: 2, kind: input, shape index: {}]
  %s3 = inlined_call_operand.hbm [shape: f32[4,8,256], index: 3, kind: output, shape index: {}]
  %s4 = sld [smem:[#allocation0]]
  $region30: #{tpu_custom_call.1} parent=0
    _
  %s6 = ssub.s32 1, %s4
  %s7 = scalar_select 0, %s6, %s4
  $region1: #{tpu_custom_call.1} parent=0
    #allocation3 [shape = 'u8[32768]{0}', space=vmem, size = 0x8000, scoped, tag = 'input window, operand 0, single buffered']
    #allocation4 [shape = 's32[1]{0}', space=sflag, size = 0x4, scoped, tag = 'scoped memory for tpu_custom_call.1']
    #allocation5 [shape = 's32[1]{0}', space=sflag, size = 0x4, scoped, tag = 'scoped memory for tpu_custom_call.1']
    #allocation6 [shape = 'u8[12288]{0}', space=vmem, size = 0x3000, scoped, tag = 'input window, operand 2, single buffered']
    #allocation7 [shape = 's32[1]{0}', space=sflag, size = 0x4, scoped, tag = 'scoped memory for tpu_custom_call.1']
    #allocation8 [shape = 'u8[32768]{0}', space=vmem, size = 0x8000, scoped, tag = 'output window, operand 0, single buffered']
    %8 = vsyncpa [#allocation4], 0
    %9 = vsyncpa [#allocation7], 0
    %10 = vsyncpa [#allocation5], 0
    // Predicated region
    $region2: #{tpu_custom_call.1} parent=1 // pred_check
      _
    $region3: #{tpu_custom_call.1} parent=1 // pred_check_branch
      %12 = sbr.rel (0) target = $region5
    $region4: #{tpu_custom_call.1} parent=1 // pred_region
      %14 = vsyncadd [#allocation4], 0
      %s15 = sshll.u32 %s0, 4
      %s16 = int_to_ptr.hbm [resolvable:$true] %s15
      %s17 = sshll.u32 [#allocation3], 4
      %s18 = int_to_ptr.vmem [resolvable:$true] %s17
      %23 = dma.hbm_to_vmem [thread:$0]  %s16, 1024, %s18, [#allocation4], 256, 256, 16
    $region5: #{tpu_custom_call.1} parent=1 // pred_fallthru
      _
    // Predicated region
    $region6: #{tpu_custom_call.1} parent=1 // pred_check
      _
    $region7: #{tpu_custom_call.1} parent=1 // pred_check_branch
      %25 = sbr.rel (0) target = $region9
    $region8: #{tpu_custom_call.1} parent=1 // pred_region
      _
    $region9: #{tpu_custom_call.1} parent=1 // pred_fallthru
      _
    // Predicated region
    $region10: #{tpu_custom_call.1} parent=1 // pred_check
      _
    $region11: #{tpu_custom_call.1} parent=1 // pred_check_branch
      %27 = sbr.rel (0) target = $region13
    $region12: #{tpu_custom_call.1} parent=1 // pred_region
      %29 = vsyncadd [#allocation7], 0
      %s30 = sshll.u32 %s2, 4
      %s31 = int_to_ptr.hbm [resolvable:$true] %s30
      %s32 = sshll.u32 [#allocation6], 4
      %s33 = int_to_ptr.vmem [resolvable:$true] %s32
      %38 = dma.hbm_to_vmem [thread:$0]  %s31, 384, %s33, [#allocation7], 128, 128, 8
    $region13: #{tpu_custom_call.1} parent=1 // pred_fallthru
      _
    // Predicated region
    $region14: #{tpu_custom_call.1} parent=1 // pred_check
      _
    $region15: #{tpu_custom_call.1} parent=1 // pred_check_branch
      %40 = sbr.rel (0) target = $region17
    $region16: #{tpu_custom_call.1} parent=1 // pred_region
      %42 = dma.done [#allocation4], 1024
    $region17: #{tpu_custom_call.1} parent=1 // pred_fallthru
      _
    // Predicated region
    $region18: #{tpu_custom_call.1} parent=1 // pred_check
      _
    $region19: #{tpu_custom_call.1} parent=1 // pred_check_branch
      %44 = sbr.rel (0) target = $region21
    $region20: #{tpu_custom_call.1} parent=1 // pred_region
      %46 = dma.done [#allocation7], 384
    $region21: #{tpu_custom_call.1} parent=1 // pred_fallthru
      _
    %v47 = vld [vmem:[#allocation3] sm:$0xff]
    %v48 = vld [vmem:[#allocation3 + $0x8] sm:$0xff]
    %v49 = vld [vmem:[#allocation3 + $0x10] sm:$0xff]
    %v50 = vld [vmem:[#allocation3 + $0x18] sm:$0xff]
    %v51 = vld [vmem:[#allocation3 + $0x20] sm:$0xff]
    %v52 = vld [vmem:[#allocation3 + $0x28] sm:$0xff]
    %v53 = vld [vmem:[#allocation3 + $0x30] sm:$0xff]
    %v54 = vld [vmem:[#allocation3 + $0x38] sm:$0xff]
    %v55 = vadd.f32 %v47, %v48
    %56 = vadd.xlane.f32.xlu0 %v55
    %v57 = vpop.xlane.xlu0 %56
    %v58 = vadd.f32 %v49, %v50
    %59 = vadd.xlane.f32.xlu0 %v58
    %v60 = vpop.xlane.xlu0 %59
    %v61 = vadd.f32 %v51, %v52
    %62 = vadd.xlane.f32.xlu0 %v61
    %v63 = vpop.xlane.xlu0 %62
    %v64 = vadd.f32 %v53, %v54
    %65 = vadd.xlane.f32.xlu0 %v64
    %v66 = vpop.xlane.xlu0 %65
    %v67 = vadd.f32 %v57, %v60
    %v68 = vadd.f32 %v67, %v63
    %v69 = vadd.f32 %v68, %v66
    %v70 = vrcp.pop 1024.0
    %v71 = vmul.f32 1024.0, %v70
    %v72 = vsub.f32 1.0, %v71
    %v73 = vmul.f32 %v70, %v72
    %v74 = vadd.f32 %v70, %v73
    %vm75 = vweird.f32 %v70
    %v76 = vsel %vm75, %v70, %v74
    %v77 = vmul.f32 %v69, %v76
    %v78 = vsub.f32 %v47, %v77
    %v79 = vsub.f32 %v48, %v77
    %v80 = vsub.f32 %v49, %v77
    %v81 = vsub.f32 %v50, %v77
    %v82 = vsub.f32 %v51, %v77
    %v83 = vsub.f32 %v52, %v77
    %v84 = vsub.f32 %v53, %v77
    %v85 = vsub.f32 %v54, %v77
    %v86 = vmul.f32 %v78, %v78
    %v87 = vmul.f32 %v79, %v79
    %v88 = vmul.f32 %v80, %v80
    %v89 = vmul.f32 %v81, %v81
    %v90 = vmul.f32 %v82, %v82
    %v91 = vmul.f32 %v83, %v83
    %v92 = vmul.f32 %v84, %v84
    %v93 = vmul.f32 %v85, %v85
    %v94 = vadd.f32 %v86, %v87
    %95 = vadd.xlane.f32.xlu0 %v94
    %v96 = vpop.xlane.xlu0 %95
    %v97 = vadd.f32 %v88, %v89
    %98 = vadd.xlane.f32.xlu0 %v97
    %v99 = vpop.xlane.xlu0 %98
    %v100 = vadd.f32 %v90, %v91
    %101 = vadd.xlane.f32.xlu0 %v100
    %v102 = vpop.xlane.xlu0 %101
    %v103 = vadd.f32 %v92, %v93
    %104 = vadd.xlane.f32.xlu0 %v103
    %v105 = vpop.xlane.xlu0 %104
    %v106 = vadd.f32 %v96, %v99
    %v107 = vadd.f32 %v106, %v102
    %v108 = vadd.f32 %v107, %v105
    %v109 = vmul.f32 %v108, %v76
    %v110 = vld [vmem:[%s1] sm:$0xff]
    %v111 = vadd.f32 %v109, 1e-05
    %v112 = vrsqrt.pop %v111
    %v113 = vmul.f32 %v112, %v111
    %v114 = vmul.f32 %v113, %v112
    %v115 = vmul.f32 0.5, %v114
    %v116 = vsub.f32 1.5, %v115
    %v117 = vmul.f32 %v112, %v116
    %vm118 = vweird.f32 %v111
    %vm119 = vweird.f32 %v112
    %vm120 = vmor %vm118, %vm119
    %v121 = vsel %vm120, %v112, %v117
    %v122 = vmul.f32 %v110, %v121
    %124 = vset.pattern.permute.xlu0 0
    %125 = vperm.xlu0 %124, %v122
    %v126 = vpop.permute.xlu0 %125
    %v128 = vmul.f32 %v78, %v126
    %v129 = vmul.f32 %v79, %v126
    %v130 = vmul.f32 %v80, %v126
    %v131 = vmul.f32 %v81, %v126
    %v132 = vmul.f32 %v82, %v126
    %v133 = vmul.f32 %v83, %v126
    %v134 = vmul.f32 %v84, %v126
    %v135 = vmul.f32 %v85, %v126
    %137 = vset.pattern.permute.xlu0 1
    %138 = vperm.xlu0 %137, %v110
    %v139 = vpop.permute.xlu0 %138
    %v141 = vadd.f32 %v128, %v139
    %v142 = vadd.f32 %v129, %v139
    %v143 = vadd.f32 %v130, %v139
    %v144 = vadd.f32 %v131, %v139
    %v145 = vadd.f32 %v132, %v139
    %v146 = vadd.f32 %v133, %v139
    %v147 = vadd.f32 %v134, %v139
    %v148 = vadd.f32 %v135, %v139
    %v149 = vmax.f32 %v141, 0.0
    %v150 = vmax.f32 %v142, 0.0
    %v151 = vmax.f32 %v143, 0.0
    %v152 = vmax.f32 %v144, 0.0
    %v153 = vmax.f32 %v145, 0.0
    %v154 = vmax.f32 %v146, 0.0
    %v155 = vmax.f32 %v147, 0.0
    %v156 = vmax.f32 %v148, 0.0
    %vm157 = vcmask 130048
    %158 = vst.msk [vmem:[#allocation2] sm:$0xff] %vm157, 0.0
    %159 = vst.msk [vmem:[#allocation2 + $0x18] sm:$0xff] %vm157, 0.0
    %160 = vst.msk [vmem:[#allocation2 + $0x30] sm:$0xff] %vm157, 0.0
    %161 = vst.msk [vmem:[#allocation2 + $0x48] sm:$0xff] %vm157, 0.0
    %vm162 = vcmask 261248
    %163 = vst.msk [vmem:[#allocation2 + $0x10] sm:$0xff] %vm162, 0.0
    %164 = vst.msk [vmem:[#allocation2 + $0x28] sm:$0xff] %vm162, 0.0
    %165 = vst.msk [vmem:[#allocation2 + $0x40] sm:$0xff] %vm162, 0.0
    %166 = vst.msk [vmem:[#allocation2 + $0x58] sm:$0xff] %vm162, 0.0
    %175 = vrot.lane.b32.xlu0 %v149, 16
    %v176 = vpop.permute.xlu0 %175
    %177 = vrot.lane.b32.xlu0 %v150, 16
    %v178 = vpop.permute.xlu0 %177
    %179 = vrot.lane.b32.xlu0 %v151, 16
    %v180 = vpop.permute.xlu0 %179
    %181 = vrot.lane.b32.xlu0 %v152, 16
    %v182 = vpop.permute.xlu0 %181
    %183 = vrot.lane.b32.xlu0 %v153, 16
    %v184 = vpop.permute.xlu0 %183
    %185 = vrot.lane.b32.xlu0 %v154, 16
    %v186 = vpop.permute.xlu0 %185
    %187 = vrot.lane.b32.xlu0 %v155, 16
    %v188 = vpop.permute.xlu0 %187
    %189 = vrot.lane.b32.xlu0 %v156, 16
    %v190 = vpop.permute.xlu0 %189
    %v191 = vsel %vm157, %v176, %v178
    %v192 = vsel %vm157, %v180, %v182
    %v193 = vsel %vm157, %v184, %v186
    %v194 = vsel %vm157, %v188, %v190
    %vm207 = vcmask 1047680
    %208 = vst.msk [vmem:[#allocation2] sm:$0xff] %vm207, %v176
    %209 = vst [vmem:[#allocation2 + $0x8] sm:$0xff] %v191
    %210 = vst.msk [vmem:[#allocation2 + $0x10] sm:$0xff] %vm157, %v178
    %211 = vst.msk [vmem:[#allocation2 + $0x18] sm:$0xff] %vm207, %v180
    %212 = vst [vmem:[#allocation2 + $0x20] sm:$0xff] %v192
    %213 = vst.msk [vmem:[#allocation2 + $0x28] sm:$0xff] %vm157, %v182
    %214 = vst.msk [vmem:[#allocation2 + $0x30] sm:$0xff] %vm207, %v184
    %215 = vst [vmem:[#allocation2 + $0x38] sm:$0xff] %v193
    %216 = vst.msk [vmem:[#allocation2 + $0x40] sm:$0xff] %vm157, %v186
    %217 = vst.msk [vmem:[#allocation2 + $0x48] sm:$0xff] %vm207, %v188
    %218 = vst [vmem:[#allocation2 + $0x50] sm:$0xff] %v194
    %219 = vst.msk [vmem:[#allocation2 + $0x58] sm:$0xff] %vm157, %v190
    %v220 = vld [vmem:[#allocation2] sm:$0xff]
    %v221 = vld [vmem:[#allocation2 + $0x8] sm:$0xff]
    %v222 = vld [vmem:[#allocation2 + $0x10] sm:$0xff]
    %v223 = vld [vmem:[#allocation6] sm:$0xff]
    %s224 = scalar_lea.vmem [#allocation6], 8
    %v225 = vld [vmem:[%s224] sm:$0xff]
    %229 = vrot.lane.b32.xlu0 %v220, 112
    %v230 = vpop.permute.xlu0 %229
    %231 = vrot.lane.b32.xlu0 %v221, 112
    %v232 = vpop.permute.xlu0 %231
    %233 = vrot.lane.b32.xlu0 %v222, 112
    %v234 = vpop.permute.xlu0 %233
    %vm235 = vcmask 916480
    %v236 = vsel %vm235, %v230, %v232
    %v237 = vsel %vm235, %v232, %v234
    %vm240 = vcmask 64512
    %v242 = vsel %vm240, %v225, 0
    %244 = vmatpush.msra.mxu0 0.0
    %245 = vmatpush.msra.mxu0 0.0
    %246 = vmatpush.msra.mxu0 0.0
    %247 = vmatpush.msra.mxu0 0.0
    %248 = vmatpush.msra.mxu0 0.0
    %249 = vmatpush.msra.mxu0 0.0
    %250 = vmatpush.msra.mxu0 0.0
    %251 = vmatpush.msra.mxu0 0.0
    %252 = vmatpush.msra.mxu0 0.0
    %253 = vmatpush.msra.mxu0 0.0
    %254 = vmatpush.msra.mxu0 0.0
    %255 = vmatpush.msra.mxu0 0.0
    %256 = vmatpush.msra.mxu0 0.0
    %257 = vmatpush.msra.mxu0 0.0
    %258 = vmatpush.msra.mxu0 0.0
    %259 = vmatpush.msra.mxu0 %v236
    %260 = vmatmul.f32.gmra.mxu0 %v242
    %v261 = vpop.f32.mrf.mxu0
    %v262 = vadd.f32 0.0, %v261
    %263 = vdwg.mxu0
    %264 = vmatpush.msra.mxu0 0.0
    %265 = vmatpush.msra.mxu0 0.0
    %266 = vmatpush.msra.mxu0 0.0
    %267 = vmatpush.msra.mxu0 0.0
    %268 = vmatpush.msra.mxu0 0.0
    %269 = vmatpush.msra.mxu0 0.0
    %270 = vmatpush.msra.mxu0 0.0
    %271 = vmatpush.msra.mxu0 0.0
    %272 = vmatpush.msra.mxu0 0.0
    %273 = vmatpush.msra.mxu0 0.0
    %274 = vmatpush.msra.mxu0 0.0
    %275 = vmatpush.msra.mxu0 0.0
    %276 = vmatpush.msra.mxu0 0.0
    %277 = vmatpush.msra.mxu0 0.0
    %278 = vmatpush.msra.mxu0 0.0
    %279 = vmatpush.msra.mxu0 %v237
    %280 = vmatmul.f32.gmra.mxu0 %v242
    %v281 = vpop.f32.mrf.mxu0
    %v282 = vadd.f32 0.0, %v281
    %283 = vdwg.mxu0
    %v285 = vsel %vm240, %v223, 0
    %287 = vmatpush.msra.mxu0 0.0
    %288 = vmatpush.msra.mxu0 0.0
    %289 = vmatpush.msra.mxu0 0.0
    %290 = vmatpush.msra.mxu0 0.0
    %291 = vmatpush.msra.mxu0 0.0
    %292 = vmatpush.msra.mxu0 0.0
    %293 = vmatpush.msra.mxu0 0.0
    %294 = vmatpush.msra.mxu0 0.0
    %295 = vmatpush.msra.mxu0 0.0
    %296 = vmatpush.msra.mxu0 0.0
    %297 = vmatpush.msra.mxu0 0.0
    %298 = vmatpush.msra.mxu0 0.0
    %299 = vmatpush.msra.mxu0 0.0
    %300 = vmatpush.msra.mxu0 0.0
    %301 = vmatpush.msra.mxu0 0.0
    %302 = vmatpush.msra.mxu0 %v220
    %303 = vmatmul.f32.gmra.mxu0 %v285
    %v304 = vpop.f32.mrf.mxu0
    %v305 = vadd.f32 %v262, %v304
    %306 = vdwg.mxu0
    %307 = vmatpush.msra.mxu0 0.0
    %308 = vmatpush.msra.mxu0 0.0
    %309 = vmatpush.msra.mxu0 0.0
    %310 = vmatpush.msra.mxu0 0.0
    %311 = vmatpush.msra.mxu0 0.0
    %312 = vmatpush.msra.mxu0 0.0
    %313 = vmatpush.msra.mxu0 0.0
    %314 = vmatpush.msra.mxu0 0.0
    %315 = vmatpush.msra.mxu0 0.0
    %316 = vmatpush.msra.mxu0 0.0
    %317 = vmatpush.msra.mxu0 0.0
    %318 = vmatpush.msra.mxu0 0.0
    %319 = vmatpush.msra.mxu0 0.0
    %320 = vmatpush.msra.mxu0 0.0
    %321 = vmatpush.msra.mxu0 0.0
    %322 = vmatpush.msra.mxu0 %v221
    %323 = vmatmul.f32.gmra.mxu0 %v285
    %v324 = vpop.f32.mrf.mxu0
    %v325 = vadd.f32 %v282, %v324
    %326 = vdwg.mxu0
    %s327 = scalar_lea.vmem [#allocation6], 16
    %v328 = vld [vmem:[%s327] sm:$0xff]
    %329 = vrot.lane.b32.xlu0 %v220, 96
    %v330 = vpop.permute.xlu0 %329
    %331 = vrot.lane.b32.xlu0 %v221, 96
    %v332 = vpop.permute.xlu0 %331
    %333 = vrot.lane.b32.xlu0 %v222, 96
    %v334 = vpop.permute.xlu0 %333
    %vm335 = vcmask 785408
    %v336 = vsel %vm335, %v330, %v332
    %v337 = vsel %vm335, %v332, %v334
    %v341 = vsel %vm240, %v328, 0
    %343 = vmatpush.msra.mxu0 0.0
    %344 = vmatpush.msra.mxu0 0.0
    %345 = vmatpush.msra.mxu0 0.0
    %346 = vmatpush.msra.mxu0 0.0
    %347 = vmatpush.msra.mxu0 0.0
    %348 = vmatpush.msra.mxu0 0.0
    %349 = vmatpush.msra.mxu0 0.0
    %350 = vmatpush.msra.mxu0 0.0
    %351 = vmatpush.msra.mxu0 0.0
    %352 = vmatpush.msra.mxu0 0.0
    %353 = vmatpush.msra.mxu0 0.0
    %354 = vmatpush.msra.mxu0 0.0
    %355 = vmatpush.msra.mxu0 0.0
    %356 = vmatpush.msra.mxu0 0.0
    %357 = vmatpush.msra.mxu0 0.0
    %358 = vmatpush.msra.mxu0 %v336
    %359 = vmatmul.f32.gmra.mxu0 %v341
    %v360 = vpop.f32.mrf.mxu0
    %v361 = vadd.f32 0.0, %v360
    %362 = vdwg.mxu0
    %363 = vmatpush.msra.mxu0 0.0
    %364 = vmatpush.msra.mxu0 0.0
    %365 = vmatpush.msra.mxu0 0.0
    %366 = vmatpush.msra.mxu0 0.0
    %367 = vmatpush.msra.mxu0 0.0
    %368 = vmatpush.msra.mxu0 0.0
    %369 = vmatpush.msra.mxu0 0.0
    %370 = vmatpush.msra.mxu0 0.0
    %371 = vmatpush.msra.mxu0 0.0
    %372 = vmatpush.msra.mxu0 0.0
    %373 = vmatpush.msra.mxu0 0.0
    %374 = vmatpush.msra.mxu0 0.0
    %375 = vmatpush.msra.mxu0 0.0
    %376 = vmatpush.msra.mxu0 0.0
    %377 = vmatpush.msra.mxu0 0.0
    %378 = vmatpush.msra.mxu0 %v337
    %379 = vmatmul.f32.gmra.mxu0 %v341
    %v380 = vpop.f32.mrf.mxu0
    %v381 = vadd.f32 0.0, %v380
    %382 = vdwg.mxu0
    %v383 = vadd.f32 %v305, %v361
    %v384 = vadd.f32 %v325, %v381
    %s385 = scalar_lea.vmem [#allocation2], 24
    %v386 = vld [vmem:[%s385] sm:$0xff]
    %v387 = vld [vmem:[%s385 + $0x8] sm:$0xff]
    %v388 = vld [vmem:[%s385 + $0x10] sm:$0xff]
    %392 = vrot.lane.b32.xlu0 %v386, 112
    %v393 = vpop.permute.xlu0 %392
    %394 = vrot.lane.b32.xlu0 %v387, 112
    %v395 = vpop.permute.xlu0 %394
    %396 = vrot.lane.b32.xlu0 %v388, 112
    %v397 = vpop.permute.xlu0 %396
    %v398 = vsel %vm235, %v393, %v395
    %v399 = vsel %vm235, %v395, %v397
    %402 = vmatpush.msra.mxu0 0.0
    %403 = vmatpush.msra.mxu0 0.0
    %404 = vmatpush.msra.mxu0 0.0
    %405 = vmatpush.msra.mxu0 0.0
    %406 = vmatpush.msra.mxu0 0.0
    %407 = vmatpush.msra.mxu0 0.0
    %408 = vmatpush.msra.mxu0 0.0
    %409 = vmatpush.msra.mxu0 0.0
    %410 = vmatpush.msra.mxu0 0.0
    %411 = vmatpush.msra.mxu0 0.0
    %412 = vmatpush.msra.mxu0 0.0
    %413 = vmatpush.msra.mxu0 0.0
    %414 = vmatpush.msra.mxu0 0.0
    %415 = vmatpush.msra.mxu0 0.0
    %416 = vmatpush.msra.mxu0 0.0
    %417 = vmatpush.msra.mxu0 %v398
    %418 = vmatmul.f32.gmra.mxu0 %v242
    %v419 = vpop.f32.mrf.mxu0
    %v420 = vadd.f32 0.0, %v419
    %421 = vdwg.mxu0
    %422 = vmatpush.msra.mxu0 0.0
    %423 = vmatpush.msra.mxu0 0.0
    %424 = vmatpush.msra.mxu0 0.0
    %425 = vmatpush.msra.mxu0 0.0
    %426 = vmatpush.msra.mxu0 0.0
    %427 = vmatpush.msra.mxu0 0.0
    %428 = vmatpush.msra.mxu0 0.0
    %429 = vmatpush.msra.mxu0 0.0
    %430 = vmatpush.msra.mxu0 0.0
    %431 = vmatpush.msra.mxu0 0.0
    %432 = vmatpush.msra.mxu0 0.0
    %433 = vmatpush.msra.mxu0 0.0
    %434 = vmatpush.msra.mxu0 0.0
    %435 = vmatpush.msra.mxu0 0.0
    %436 = vmatpush.msra.mxu0 0.0
    %437 = vmatpush.msra.mxu0 %v399
    %438 = vmatmul.f32.gmra.mxu0 %v242
    %v439 = vpop.f32.mrf.mxu0
    %v440 = vadd.f32 0.0, %v439
    %441 = vdwg.mxu0
    %442 = vmatpush.msra.mxu0 0.0
    %443 = vmatpush.msra.mxu0 0.0
    %444 = vmatpush.msra.mxu0 0.0
    %445 = vmatpush.msra.mxu0 0.0
    %446 = vmatpush.msra.mxu0 0.0
    %447 = vmatpush.msra.mxu0 0.0
    %448 = vmatpush.msra.mxu0 0.0
    %449 = vmatpush.msra.mxu0 0.0
    %450 = vmatpush.msra.mxu0 0.0
    %451 = vmatpush.msra.mxu0 0.0
    %452 = vmatpush.msra.mxu0 0.0
    %453 = vmatpush.msra.mxu0 0.0
    %454 = vmatpush.msra.mxu0 0.0
    %455 = vmatpush.msra.mxu0 0.0
    %456 = vmatpush.msra.mxu0 0.0
    %457 = vmatpush.msra.mxu0 %v386
    %458 = vmatmul.f32.gmra.mxu0 %v285
    %v459 = vpop.f32.mrf.mxu0
    %v460 = vadd.f32 %v420, %v459
    %461 = vdwg.mxu0
    %462 = vmatpush.msra.mxu0 0.0
    %463 = vmatpush.msra.mxu0 0.0
    %464 = vmatpush.msra.mxu0 0.0
    %465 = vmatpush.msra.mxu0 0.0
    %466 = vmatpush.msra.mxu0 0.0
    %467 = vmatpush.msra.mxu0 0.0
    %468 = vmatpush.msra.mxu0 0.0
    %469 = vmatpush.msra.mxu0 0.0
    %470 = vmatpush.msra.mxu0 0.0
    %471 = vmatpush.msra.mxu0 0.0
    %472 = vmatpush.msra.mxu0 0.0
    %473 = vmatpush.msra.mxu0 0.0
    %474 = vmatpush.msra.mxu0 0.0
    %475 = vmatpush.msra.mxu0 0.0
    %476 = vmatpush.msra.mxu0 0.0
    %477 = vmatpush.msra.mxu0 %v387
    %478 = vmatmul.f32.gmra.mxu0 %v285
    %v479 = vpop.f32.mrf.mxu0
    %v480 = vadd.f32 %v440, %v479
    %481 = vdwg.mxu0
    %482 = vrot.lane.b32.xlu0 %v386, 96
    %v483 = vpop.permute.xlu0 %482
    %484 = vrot.lane.b32.xlu0 %v387, 96
    %v485 = vpop.permute.xlu0 %484
    %486 = vrot.lane.b32.xlu0 %v388, 96
    %v487 = vpop.permute.xlu0 %486
    %v488 = vsel %vm335, %v483, %v485
    %v489 = vsel %vm335, %v485, %v487
    %492 = vmatpush.msra.mxu0 0.0
    %493 = vmatpush.msra.mxu0 0.0
    %494 = vmatpush.msra.mxu0 0.0
    %495 = vmatpush.msra.mxu0 0.0
    %496 = vmatpush.msra.mxu0 0.0
    %497 = vmatpush.msra.mxu0 0.0
    %498 = vmatpush.msra.mxu0 0.0
    %499 = vmatpush.msra.mxu0 0.0
    %500 = vmatpush.msra.mxu0 0.0
    %501 = vmatpush.msra.mxu0 0.0
    %502 = vmatpush.msra.mxu0 0.0
    %503 = vmatpush.msra.mxu0 0.0
    %504 = vmatpush.msra.mxu0 0.0
    %505 = vmatpush.msra.mxu0 0.0
    %506 = vmatpush.msra.mxu0 0.0
    %507 = vmatpush.msra.mxu0 %v488
    %508 = vmatmul.f32.gmra.mxu0 %v341
    %v509 = vpop.f32.mrf.mxu0
    %v510 = vadd.f32 0.0, %v509
    %511 = vdwg.mxu0
    %512 = vmatpush.msra.mxu0 0.0
    %513 = vmatpush.msra.mxu0 0.0
    %514 = vmatpush.msra.mxu0 0.0
    %515 = vmatpush.msra.mxu0 0.0
    %516 = vmatpush.msra.mxu0 0.0
    %517 = vmatpush.msra.mxu0 0.0
    %518 = vmatpush.msra.mxu0 0.0
    %519 = vmatpush.msra.mxu0 0.0
    %520 = vmatpush.msra.mxu0 0.0
    %521 = vmatpush.msra.mxu0 0.0
    %522 = vmatpush.msra.mxu0 0.0
    %523 = vmatpush.msra.mxu0 0.0
    %524 = vmatpush.msra.mxu0 0.0
    %525 = vmatpush.msra.mxu0 0.0
    %526 = vmatpush.msra.mxu0 0.0
    %527 = vmatpush.msra.mxu0 %v489
    %528 = vmatmul.f32.gmra.mxu0 %v341
    %v529 = vpop.f32.mrf.mxu0
    %v530 = vadd.f32 0.0, %v529
    %531 = vdwg.mxu0
    %v532 = vadd.f32 %v460, %v510
    %v533 = vadd.f32 %v480, %v530
    %s534 = scalar_lea.vmem [#allocation2], 48
    %v535 = vld [vmem:[%s534] sm:$0xff]
    %v536 = vld [vmem:[%s534 + $0x8] sm:$0xff]
    %v537 = vld [vmem:[%s534 + $0x10] sm:$0xff]
    %541 = vrot.lane.b32.xlu0 %v535, 112
    %v542 = vpop.permute.xlu0 %541
    %543 = vrot.lane.b32.xlu0 %v536, 112
    %v544 = vpop.permute.xlu0 %543
    %545 = vrot.lane.b32.xlu0 %v537, 112
    %v546 = vpop.permute.xlu0 %545
    %v547 = vsel %vm235, %v542, %v544
    %v548 = vsel %vm235, %v544, %v546
    %551 = vmatpush.msra.mxu0 0.0
    %552 = vmatpush.msra.mxu0 0.0
    %553 = vmatpush.msra.mxu0 0.0
    %554 = vmatpush.msra.mxu0 0.0
    %555 = vmatpush.msra.mxu0 0.0
    %556 = vmatpush.msra.mxu0 0.0
    %557 = vmatpush.msra.mxu0 0.0
    %558 = vmatpush.msra.mxu0 0.0
    %559 = vmatpush.msra.mxu0 0.0
    %560 = vmatpush.msra.mxu0 0.0
    %561 = vmatpush.msra.mxu0 0.0
    %562 = vmatpush.msra.mxu0 0.0
    %563 = vmatpush.msra.mxu0 0.0
    %564 = vmatpush.msra.mxu0 0.0
    %565 = vmatpush.msra.mxu0 0.0
    %566 = vmatpush.msra.mxu0 %v547
    %567 = vmatmul.f32.gmra.mxu0 %v242
    %v568 = vpop.f32.mrf.mxu0
    %v569 = vadd.f32 0.0, %v568
    %570 = vdwg.mxu0
    %571 = vmatpush.msra.mxu0 0.0
    %572 = vmatpush.msra.mxu0 0.0
    %573 = vmatpush.msra.mxu0 0.0
    %574 = vmatpush.msra.mxu0 0.0
    %575 = vmatpush.msra.mxu0 0.0
    %576 = vmatpush.msra.mxu0 0.0
    %577 = vmatpush.msra.mxu0 0.0
    %578 = vmatpush.msra.mxu0 0.0
    %579 = vmatpush.msra.mxu0 0.0
    %580 = vmatpush.msra.mxu0 0.0
    %581 = vmatpush.msra.mxu0 0.0
    %582 = vmatpush.msra.mxu0 0.0
    %583 = vmatpush.msra.mxu0 0.0
    %584 = vmatpush.msra.mxu0 0.0
    %585 = vmatpush.msra.mxu0 0.0
    %586 = vmatpush.msra.mxu0 %v548
    %587 = vmatmul.f32.gmra.mxu0 %v242
    %v588 = vpop.f32.mrf.mxu0
    %v589 = vadd.f32 0.0, %v588
    %590 = vdwg.mxu0
    %591 = vmatpush.msra.mxu0 0.0
    %592 = vmatpush.msra.mxu0 0.0
    %593 = vmatpush.msra.mxu0 0.0
    %594 = vmatpush.msra.mxu0 0.0
    %595 = vmatpush.msra.mxu0 0.0
    %596 = vmatpush.msra.mxu0 0.0
    %597 = vmatpush.msra.mxu0 0.0
    %598 = vmatpush.msra.mxu0 0.0
    %599 = vmatpush.msra.mxu0 0.0
    %600 = vmatpush.msra.mxu0 0.0
    %601 = vmatpush.msra.mxu0 0.0
    %602 = vmatpush.msra.mxu0 0.0
    %603 = vmatpush.msra.mxu0 0.0
    %604 = vmatpush.msra.mxu0 0.0
    %605 = vmatpush.msra.mxu0 0.0
    %606 = vmatpush.msra.mxu0 %v535
    %607 = vmatmul.f32.gmra.mxu0 %v285
    %v608 = vpop.f32.mrf.mxu0
    %v609 = vadd.f32 %v569, %v608
    %610 = vdwg.mxu0
    %611 = vmatpush.msra.mxu0 0.0
    %612 = vmatpush.msra.mxu0 0.0
    %613 = vmatpush.msra.mxu0 0.0
    %614 = vmatpush.msra.mxu0 0.0
    %615 = vmatpush.msra.mxu0 0.0
    %616 = vmatpush.msra.mxu0 0.0
    %617 = vmatpush.msra.mxu0 0.0
    %618 = vmatpush.msra.mxu0 0.0
    %619 = vmatpush.msra.mxu0 0.0
    %620 = vmatpush.msra.mxu0 0.0
    %621 = vmatpush.msra.mxu0 0.0
    %622 = vmatpush.msra.mxu0 0.0
    %623 = vmatpush.msra.mxu0 0.0
    %624 = vmatpush.msra.mxu0 0.0
    %625 = vmatpush.msra.mxu0 0.0
    %626 = vmatpush.msra.mxu0 %v536
    %627 = vmatmul.f32.gmra.mxu0 %v285
    %v628 = vpop.f32.mrf.mxu0
    %v629 = vadd.f32 %v589, %v628
    %630 = vdwg.mxu0
    %631 = vrot.lane.b32.xlu0 %v535, 96
    %v632 = vpop.permute.xlu0 %631
    %633 = vrot.lane.b32.xlu0 %v536, 96
    %v634 = vpop.permute.xlu0 %633
    %635 = vrot.lane.b32.xlu0 %v537, 96
    %v636 = vpop.permute.xlu0 %635
    %v637 = vsel %vm335, %v632, %v634
    %v638 = vsel %vm335, %v634, %v636
    %641 = vmatpush.msra.mxu0 0.0
    %642 = vmatpush.msra.mxu0 0.0
    %643 = vmatpush.msra.mxu0 0.0
    %644 = vmatpush.msra.mxu0 0.0
    %645 = vmatpush.msra.mxu0 0.0
    %646 = vmatpush.msra.mxu0 0.0
    %647 = vmatpush.msra.mxu0 0.0
    %648 = vmatpush.msra.mxu0 0.0
    %649 = vmatpush.msra.mxu0 0.0
    %650 = vmatpush.msra.mxu0 0.0
    %651 = vmatpush.msra.mxu0 0.0
    %652 = vmatpush.msra.mxu0 0.0
    %653 = vmatpush.msra.mxu0 0.0
    %654 = vmatpush.msra.mxu0 0.0
    %655 = vmatpush.msra.mxu0 0.0
    %656 = vmatpush.msra.mxu0 %v637
    %657 = vmatmul.f32.gmra.mxu0 %v341
    %v658 = vpop.f32.mrf.mxu0
    %v659 = vadd.f32 0.0, %v658
    %660 = vdwg.mxu0
    %661 = vmatpush.msra.mxu0 0.0
    %662 = vmatpush.msra.mxu0 0.0
    %663 = vmatpush.msra.mxu0 0.0
    %664 = vmatpush.msra.mxu0 0.0
    %665 = vmatpush.msra.mxu0 0.0
    %666 = vmatpush.msra.mxu0 0.0
    %667 = vmatpush.msra.mxu0 0.0
    %668 = vmatpush.msra.mxu0 0.0
    %669 = vmatpush.msra.mxu0 0.0
    %670 = vmatpush.msra.mxu0 0.0
    %671 = vmatpush.msra.mxu0 0.0
    %672 = vmatpush.msra.mxu0 0.0
    %673 = vmatpush.msra.mxu0 0.0
    %674 = vmatpush.msra.mxu0 0.0
    %675 = vmatpush.msra.mxu0 0.0
    %676 = vmatpush.msra.mxu0 %v638
    %677 = vmatmul.f32.gmra.mxu0 %v341
    %v678 = vpop.f32.mrf.mxu0
    %v679 = vadd.f32 0.0, %v678
    %680 = vdwg.mxu0
    %v681 = vadd.f32 %v609, %v659
    %v682 = vadd.f32 %v629, %v679
    %s683 = scalar_lea.vmem [#allocation2], 72
    %v684 = vld [vmem:[%s683] sm:$0xff]
    %v685 = vld [vmem:[%s683 + $0x8] sm:$0xff]
    %v686 = vld [vmem:[%s683 + $0x10] sm:$0xff]
    %690 = vrot.lane.b32.xlu0 %v684, 112
    %v691 = vpop.permute.xlu0 %690
    %692 = vrot.lane.b32.xlu0 %v685, 112
    %v693 = vpop.permute.xlu0 %692
    %694 = vrot.lane.b32.xlu0 %v686, 112
    %v695 = vpop.permute.xlu0 %694
    %v696 = vsel %vm235, %v691, %v693
    %v697 = vsel %vm235, %v693, %v695
    %700 = vmatpush.msra.mxu0 0.0
    %701 = vmatpush.msra.mxu0 0.0
    %702 = vmatpush.msra.mxu0 0.0
    %703 = vmatpush.msra.mxu0 0.0
    %704 = vmatpush.msra.mxu0 0.0
    %705 = vmatpush.msra.mxu0 0.0
    %706 = vmatpush.msra.mxu0 0.0
    %707 = vmatpush.msra.mxu0 0.0
    %708 = vmatpush.msra.mxu0 0.0
    %709 = vmatpush.msra.mxu0 0.0
    %710 = vmatpush.msra.mxu0 0.0
    %711 = vmatpush.msra.mxu0 0.0
    %712 = vmatpush.msra.mxu0 0.0
    %713 = vmatpush.msra.mxu0 0.0
    %714 = vmatpush.msra.mxu0 0.0
    %715 = vmatpush.msra.mxu0 %v696
    %716 = vmatmul.f32.gmra.mxu0 %v242
    %v717 = vpop.f32.mrf.mxu0
    %v718 = vadd.f32 0.0, %v717
    %719 = vdwg.mxu0
    %720 = vmatpush.msra.mxu0 0.0
    %721 = vmatpush.msra.mxu0 0.0
    %722 = vmatpush.msra.mxu0 0.0
    %723 = vmatpush.msra.mxu0 0.0
    %724 = vmatpush.msra.mxu0 0.0
    %725 = vmatpush.msra.mxu0 0.0
    %726 = vmatpush.msra.mxu0 0.0
    %727 = vmatpush.msra.mxu0 0.0
    %728 = vmatpush.msra.mxu0 0.0
    %729 = vmatpush.msra.mxu0 0.0
    %730 = vmatpush.msra.mxu0 0.0
    %731 = vmatpush.msra.mxu0 0.0
    %732 = vmatpush.msra.mxu0 0.0
    %733 = vmatpush.msra.mxu0 0.0
    %734 = vmatpush.msra.mxu0 0.0
    %735 = vmatpush.msra.mxu0 %v697
    %736 = vmatmul.f32.gmra.mxu0 %v242
    %v737 = vpop.f32.mrf.mxu0
    %v738 = vadd.f32 0.0, %v737
    %739 = vdwg.mxu0
    %740 = vmatpush.msra.mxu0 0.0
    %741 = vmatpush.msra.mxu0 0.0
    %742 = vmatpush.msra.mxu0 0.0
    %743 = vmatpush.msra.mxu0 0.0
    %744 = vmatpush.msra.mxu0 0.0
    %745 = vmatpush.msra.mxu0 0.0
    %746 = vmatpush.msra.mxu0 0.0
    %747 = vmatpush.msra.mxu0 0.0
    %748 = vmatpush.msra.mxu0 0.0
    %749 = vmatpush.msra.mxu0 0.0
    %750 = vmatpush.msra.mxu0 0.0
    %751 = vmatpush.msra.mxu0 0.0
    %752 = vmatpush.msra.mxu0 0.0
    %753 = vmatpush.msra.mxu0 0.0
    %754 = vmatpush.msra.mxu0 0.0
    %755 = vmatpush.msra.mxu0 %v684
    %756 = vmatmul.f32.gmra.mxu0 %v285
    %v757 = vpop.f32.mrf.mxu0
    %v758 = vadd.f32 %v718, %v757
    %759 = vdwg.mxu0
    %760 = vmatpush.msra.mxu0 0.0
    %761 = vmatpush.msra.mxu0 0.0
    %762 = vmatpush.msra.mxu0 0.0
    %763 = vmatpush.msra.mxu0 0.0
    %764 = vmatpush.msra.mxu0 0.0
    %765 = vmatpush.msra.mxu0 0.0
    %766 = vmatpush.msra.mxu0 0.0
    %767 = vmatpush.msra.mxu0 0.0
    %768 = vmatpush.msra.mxu0 0.0
    %769 = vmatpush.msra.mxu0 0.0
    %770 = vmatpush.msra.mxu0 0.0
    %771 = vmatpush.msra.mxu0 0.0
    %772 = vmatpush.msra.mxu0 0.0
    %773 = vmatpush.msra.mxu0 0.0
    %774 = vmatpush.msra.mxu0 0.0
    %775 = vmatpush.msra.mxu0 %v685
    %776 = vmatmul.f32.gmra.mxu0 %v285
    %v777 = vpop.f32.mrf.mxu0
    %v778 = vadd.f32 %v738, %v777
    %779 = vdwg.mxu0
    %780 = vrot.lane.b32.xlu0 %v684, 96
    %v781 = vpop.permute.xlu0 %780
    %782 = vrot.lane.b32.xlu0 %v685, 96
    %v783 = vpop.permute.xlu0 %782
    %784 = vrot.lane.b32.xlu0 %v686, 96
    %v785 = vpop.permute.xlu0 %784
    %v786 = vsel %vm335, %v781, %v783
    %v787 = vsel %vm335, %v783, %v785
    %790 = vmatpush.msra.mxu0 0.0
    %791 = vmatpush.msra.mxu0 0.0
    %792 = vmatpush.msra.mxu0 0.0
    %793 = vmatpush.msra.mxu0 0.0
    %794 = vmatpush.msra.mxu0 0.0
    %795 = vmatpush.msra.mxu0 0.0
    %796 = vmatpush.msra.mxu0 0.0
    %797 = vmatpush.msra.mxu0 0.0
    %798 = vmatpush.msra.mxu0 0.0
    %799 = vmatpush.msra.mxu0 0.0
    %800 = vmatpush.msra.mxu0 0.0
    %801 = vmatpush.msra.mxu0 0.0
    %802 = vmatpush.msra.mxu0 0.0
    %803 = vmatpush.msra.mxu0 0.0
    %804 = vmatpush.msra.mxu0 0.0
    %805 = vmatpush.msra.mxu0 %v786
    %806 = vmatmul.f32.gmra.mxu0 %v341
    %v807 = vpop.f32.mrf.mxu0
    %v808 = vadd.f32 0.0, %v807
    %809 = vdwg.mxu0
    %810 = vmatpush.msra.mxu0 0.0
    %811 = vmatpush.msra.mxu0 0.0
    %812 = vmatpush.msra.mxu0 0.0
    %813 = vmatpush.msra.mxu0 0.0
    %814 = vmatpush.msra.mxu0 0.0
    %815 = vmatpush.msra.mxu0 0.0
    %816 = vmatpush.msra.mxu0 0.0
    %817 = vmatpush.msra.mxu0 0.0
    %818 = vmatpush.msra.mxu0 0.0
    %819 = vmatpush.msra.mxu0 0.0
    %820 = vmatpush.msra.mxu0 0.0
    %821 = vmatpush.msra.mxu0 0.0
    %822 = vmatpush.msra.mxu0 0.0
    %823 = vmatpush.msra.mxu0 0.0
    %824 = vmatpush.msra.mxu0 0.0
    %825 = vmatpush.msra.mxu0 %v787
    %826 = vmatmul.f32.gmra.mxu0 %v341
    %v827 = vpop.f32.mrf.mxu0
    %v828 = vadd.f32 0.0, %v827
    %829 = vdwg.mxu0
    %v830 = vadd.f32 %v758, %v808
    %v831 = vadd.f32 %v778, %v828
    %v832 = vadd.f32 %v383, %v384
    %833 = vadd.xlane.f32.xlu0 %v832
    %v834 = vpop.xlane.xlu0 %833
    %v835 = vadd.f32 %v834, 0.0
    %v836 = vadd.f32 %v532, %v533
    %837 = vadd.xlane.f32.xlu0 %v836
    %v838 = vpop.xlane.xlu0 %837
    %v839 = vadd.f32 %v835, %v838
    %v840 = vadd.f32 %v681, %v682
    %841 = vadd.xlane.f32.xlu0 %v840
    %v842 = vpop.xlane.xlu0 %841
    %v843 = vadd.f32 %v839, %v842
    %v844 = vadd.f32 %v830, %v831
    %845 = vadd.xlane.f32.xlu0 %v844
    %v846 = vpop.xlane.xlu0 %845
    %v847 = vadd.f32 %v843, %v846
    %v848 = vmul.f32 %v847, %v76
    %v849 = vsub.f32 %v383, %v848
    %v850 = vsub.f32 %v384, %v848
    %v851 = vmul.f32 %v849, %v849
    %v852 = vmul.f32 %v850, %v850
    %v853 = vadd.f32 %v851, %v852
    %854 = vadd.xlane.f32.xlu0 %v853
    %v855 = vpop.xlane.xlu0 %854
    %v856 = vadd.f32 %v855, 0.0
    %v857 = vsub.f32 %v532, %v848
    %v858 = vsub.f32 %v533, %v848
    %v859 = vmul.f32 %v857, %v857
    %v860 = vmul.f32 %v858, %v858
    %v861 = vadd.f32 %v859, %v860
    %862 = vadd.xlane.f32.xlu0 %v861
    %v863 = vpop.xlane.xlu0 %862
    %v864 = vadd.f32 %v856, %v863
    %v865 = vsub.f32 %v681, %v848
    %v866 = vsub.f32 %v682, %v848
    %v867 = vmul.f32 %v865, %v865
    %v868 = vmul.f32 %v866, %v866
    %v869 = vadd.f32 %v867, %v868
    %870 = vadd.xlane.f32.xlu0 %v869
    %v871 = vpop.xlane.xlu0 %870
    %v872 = vadd.f32 %v864, %v871
    %v873 = vsub.f32 %v830, %v848
    %v874 = vsub.f32 %v831, %v848
    %v875 = vmul.f32 %v873, %v873
    %v876 = vmul.f32 %v874, %v874
    %v877 = vadd.f32 %v875, %v876
    %878 = vadd.xlane.f32.xlu0 %v877
    %v879 = vpop.xlane.xlu0 %878
    %v880 = vadd.f32 %v872, %v879
    %v881 = vmul.f32 %v880, %v76
    %v882 = vld [vmem:[%s1] sm:$0xff]
    %v883 = vadd.f32 %v881, 1e-05
    %v884 = vrsqrt.pop %v883
    %v885 = vmul.f32 %v884, %v883
    %v886 = vmul.f32 %v885, %v884
    %v887 = vmul.f32 0.5, %v886
    %v888 = vsub.f32 1.5, %v887
    %v889 = vmul.f32 %v884, %v888
    %vm890 = vweird.f32 %v883
    %vm891 = vweird.f32 %v884
    %vm892 = vmor %vm890, %vm891
    %v893 = vsel %vm892, %v884, %v889
    %v894 = vmul.f32 %v882, %v893
    %896 = vset.pattern.permute.xlu0 2
    %897 = vperm.xlu0 %896, %v894
    %v898 = vpop.permute.xlu0 %897
    %v900 = vmul.f32 %v849, %v898
    %v901 = vmul.f32 %v850, %v898
    %903 = vset.pattern.permute.xlu0 3
    %904 = vperm.xlu0 %903, %v882
    %v905 = vpop.permute.xlu0 %904
    %v907 = vadd.f32 %v900, %v905
    %v908 = vadd.f32 %v901, %v905
    %909 = vst [vmem:[#allocation8] sm:$0xff] %v907
    %910 = vst [vmem:[#allocation8 + $0x8] sm:$0xff] %v908
    %v911 = vmul.f32 %v857, %v898
    %v912 = vmul.f32 %v858, %v898
    %v913 = vadd.f32 %v911, %v905
    %v914 = vadd.f32 %v912, %v905
    %s915 = scalar_lea.vmem [#allocation8], 16
    %916 = vst [vmem:[%s915] sm:$0xff] %v913
    %917 = vst [vmem:[%s915 + $0x8] sm:$0xff] %v914
    %v918 = vmul.f32 %v865, %v898
    %v919 = vmul.f32 %v866, %v898
    %v920 = vadd.f32 %v918, %v905
    %v921 = vadd.f32 %v919, %v905
    %s922 = scalar_lea.vmem [#allocation8], 32
    %923 = vst [vmem:[%s922] sm:$0xff] %v920
    %924 = vst [vmem:[%s922 + $0x8] sm:$0xff] %v921
    %v925 = vmul.f32 %v873, %v898
    %v926 = vmul.f32 %v874, %v898
    %v927 = vadd.f32 %v925, %v905
    %v928 = vadd.f32 %v926, %v905
    %s929 = scalar_lea.vmem [#allocation8], 48
    %930 = vst [vmem:[%s929] sm:$0xff] %v927
    %931 = vst [vmem:[%s929 + $0x8] sm:$0xff] %v928
    // Predicated region
    $region22: #{tpu_custom_call.1} parent=1 // pred_check
      _
    $region23: #{tpu_custom_call.1} parent=1 // pred_check_branch
      %933 = sbr.rel (0) target = $region25
    $region24: #{tpu_custom_call.1} parent=1 // pred_region
      %935 = vsyncadd [#allocation5], 0
      %s936 = sshll.u32 [#allocation8], 4
      %s937 = int_to_ptr.vmem [resolvable:$true] %s936
      %s938 = sshll.u32 %s3, 4
      %s939 = int_to_ptr.hbm [resolvable:$true] %s938
      %944 = dma.vmem_to_hbm [thread:$0]  %s937, 1024, %s939, [#allocation5], 256, 256, 16
    $region25: #{tpu_custom_call.1} parent=1 // pred_fallthru
      _
    // Predicated region
    $region26: #{tpu_custom_call.1} parent=1 // pred_check
      _
    $region27: #{tpu_custom_call.1} parent=1 // pred_check_branch
      %946 = sbr.rel (0) target = $region29
    $region28: #{tpu_custom_call.1} parent=1 // pred_region
      %948 = dma.done [#allocation5], 1024
    $region29: #{tpu_custom_call.1} parent=1 // pred_fallthru
      _
    %949 = vsyncpa [#allocation4], 1
    %950 = vsyncpa [#allocation7], 1
    %951 = vsyncpa [#allocation5], 1

</llo_original>
